<compile_context>
chip_gen: v6e
topology: v6e:2x2x1
jax: 0.10.0
libtpu: 0.0.40
codegen_flags: <defaults>
</compile_context>

<pallas_src>
import jax
import jax.numpy as jnp
from jax.experimental import pallas as pl
from jax.experimental.pallas import tpu as pltpu


def _make_transform_kernel(eps, hidden):
    eps = float(eps)
    inv_h = 1.0 / float(hidden)

    def kernel(x_ref, w_ref, b_ref, gamma_ref, beta_ref, o_ref):
        # x_ref:     (TM, H) tile of tokens (native dtype)
        # w_ref:     (H, H)  dense weight, PyTorch [out, in] layout, VMEM-resident
        # b_ref:     (1, H)  dense bias (f32)
        # gamma_ref: (1, H)  LayerNorm weight (f32)
        # beta_ref:  (1, H)  LayerNorm bias (f32)

        # Dense: y[m, o] = sum_i x[m, i] * w[o, i]   (MXU, f32 accumulation)
        y = jax.lax.dot_general(
            x_ref[...], w_ref[...],
            dimension_numbers=(((1,), (1,)), ((), ())),
            preferred_element_type=jnp.float32,
        )
        y = y + b_ref[...]

        # ReLU
        y = jnp.maximum(y, 0.0)

        # LayerNorm over the hidden axis (biased variance, like torch), with the
        # two statistics fused into a single reduction pass.
        mean = jnp.sum(y, axis=-1, keepdims=True) * inv_h
        mean_sq = jnp.sum(y * y, axis=-1, keepdims=True) * inv_h
        var = jnp.maximum(mean_sq - mean * mean, 0.0)
        inv_std = jax.lax.rsqrt(var + eps)
        out = (y - mean) * inv_std * gamma_ref[...] + beta_ref[...]

        o_ref[...] = out.astype(o_ref.dtype)

    return kernel


_MIB = 1024 * 1024
# Conservative working-set budget that fits every generation (v7x has only
# 64 MiB of physical VMEM per TensorCore).
_VMEM_BUDGET = 48 * _MIB


def _round_up(x, m):
    return ((x + m - 1) // m) * m


def _vmem_estimate(tm, hidden, x_bytes, w_bytes, out_bytes):
    weight = hidden * hidden * w_bytes                 # resident, single copy
    params = 3 * hidden * 4                            # bias / gamma / beta (f32)
    tiles = 2 * tm * hidden * (x_bytes + out_bytes)    # double-buffered in/out tiles
    interim = 3 * tm * hidden * 4                      # live f32 temporaries
    return weight + params + tiles + interim


def bert_prediction_head_transform(hidden_states, dense_w, dense_b,
                                   ln_gamma, ln_beta, layer_norm_eps,
                                   *, tile_rows=256):
    """hidden_states: [..., H]; dense_w: [H, H] in PyTorch layout (out x in)."""
    orig_shape = hidden_states.shape
    H = orig_shape[-1]
    x2d = hidden_states.reshape(-1, H)
    N = x2d.shape[0]

    x_bytes = x2d.dtype.itemsize
    w_bytes = dense_w.dtype.itemsize
    out_bytes = x_bytes

    # Tile rows: start from tile_rows (256 fills the MXU M dim on v6e/v7x and
    # amortizes per-step overhead), clamp to the 8-aligned problem size, then
    # shrink until the working set fits the VMEM budget.
    tm = max(8, min(_round_up(tile_rows, 8), _round_up(N, 8)))
    while tm > 8 and _vmem_estimate(tm, H, x_bytes, w_bytes, out_bytes) > _VMEM_BUDGET:
        tm = max(8, tm // 2)
    # TODO(synk): for very large H (H^2 * itemsize approaching the VMEM budget)
    # the weight should additionally be tiled over the contraction dim instead
    # of being kept fully resident.

    b = dense_b.reshape(1, H).astype(jnp.float32)
    gamma = ln_gamma.reshape(1, H).astype(jnp.float32)
    beta = ln_beta.reshape(1, H).astype(jnp.float32)

    grid = (pl.cdiv(N, tm),)
    kernel = _make_transform_kernel(layer_norm_eps, H)

    # Grid-invariant operands: whole array, single copy, resident in VMEM.
    resident = pl.BlockSpec(memory_space=pltpu.MemorySpace.VMEM)

    out = pl.pallas_call(
        kernel,
        out_shape=jax.ShapeDtypeStruct((N, H), hidden_states.dtype),
        grid_spec=pltpu.PrefetchScalarGridSpec(
            num_scalar_prefetch=0,
            grid=grid,
            in_specs=[
                pl.BlockSpec((tm, H), lambda i: (i, 0)),  # x tile (pipelined)
                resident,                                  # dense weight [out, in]
                resident,                                  # dense bias
                resident,                                  # LN gamma
                resident,                                  # LN beta
            ],
            out_specs=pl.BlockSpec((tm, H), lambda i: (i, 0)),
        ),
        compiler_params=pltpu.CompilerParams(
            dimension_semantics=("parallel",),
            # Stay below v7x's 64 MiB physical VMEM while allowing bigger tiles
            # than the 16/32 MiB scoped defaults on v5e/v6e.
            vmem_limit_bytes=56 * _MIB,
        ),
    )(x2d, dense_w, b, gamma, beta)

    return out.reshape(orig_shape)


def _reference(hidden_states, dense_w, dense_b, ln_gamma, ln_beta, eps):
    x = hidden_states.astype(jnp.float32)
    y = jnp.einsum("...i,oi->...o", x, dense_w.astype(jnp.float32)) + dense_b
    y = jnp.maximum(y, 0.0)
    mean = jnp.mean(y, axis=-1, keepdims=True)
    var = jnp.mean((y - mean) ** 2, axis=-1, keepdims=True)
    return ((y - mean) / jnp.sqrt(var + eps)) * ln_gamma + ln_beta


if __name__ == "__main__":
    # Small config: batch=2, seq=8, hidden=32, layer_norm_eps=1e-12 (BERT default).
    batch, seq, hidden = 2, 8, 32
    layer_norm_eps = 1e-12

    key = jax.random.PRNGKey(0)
    k_x, k_w, k_b = jax.random.split(key, 3)

    hidden_states = jax.random.normal(k_x, (batch, seq, hidden), dtype=jnp.float32)

    # Deterministic parameter init (mimicking nn.Linear's uniform init scale).
    bound = 1.0 / jnp.sqrt(hidden)
    dense_w = jax.random.uniform(k_w, (hidden, hidden), minval=-bound, maxval=bound,
                                 dtype=jnp.float32)  # PyTorch layout: [out, in]
    dense_b = jax.random.uniform(k_b, (hidden,), minval=-bound, maxval=bound,
                                 dtype=jnp.float32)
    ln_gamma = jnp.ones((hidden,), dtype=jnp.float32)   # nn.LayerNorm default
    ln_beta = jnp.zeros((hidden,), dtype=jnp.float32)

    out = bert_prediction_head_transform(
        hidden_states, dense_w, dense_b, ln_gamma, ln_beta, layer_norm_eps)
    out = jax.block_until_ready(out)

    ref = _reference(hidden_states, dense_w, dense_b, ln_gamma, ln_beta, layer_norm_eps)
    assert out.shape == (batch, seq, hidden)
    assert jnp.allclose(out, ref, atol=1e-4, rtol=1e-4), "mismatch vs reference"

    print("KERNEL_OK")
</pallas_src>

<mosaic_0001>
module attributes {stable_mosaic.version = 11 : i64} {
  func.func @kernel(%arg0: i32, %arg1: memref<16x32xf32, #tpu.memory_space<vmem>>, %arg2: memref<32x32xf32, #tpu.memory_space<vmem>>, %arg3: memref<1x32xf32, #tpu.memory_space<vmem>>, %arg4: memref<1x32xf32, #tpu.memory_space<vmem>>, %arg5: memref<1x32xf32, #tpu.memory_space<vmem>>, %arg6: memref<16x32xf32, #tpu.memory_space<vmem>>) attributes {dimension_semantics = [#tpu.dimension_semantics<parallel>], iteration_bounds = array<i64: 1>, scalar_prefetch = 0 : i64, scratch_operands = 0 : i64, tpu.core_type = #tpu.core_type<tc>, window_params = [{transform_indices = @transform_0, window_bounds = array<i64: 16, 32>}, {pipeline_mode = #tpu.pipeline_mode<synchronous>, transform_indices = @transform_1, window_bounds = array<i64: 32, 32>}, {pipeline_mode = #tpu.pipeline_mode<synchronous>, transform_indices = @transform_2, window_bounds = array<i64: 1, 32>}, {pipeline_mode = #tpu.pipeline_mode<synchronous>, transform_indices = @transform_3, window_bounds = array<i64: 1, 32>}, {pipeline_mode = #tpu.pipeline_mode<synchronous>, transform_indices = @transform_4, window_bounds = array<i64: 1, 32>}, {transform_indices = @transform_5, window_bounds = array<i64: 16, 32>}]} {
    %c0 = arith.constant 0 : index
    %c0_0 = arith.constant 0 : index
    %0 = vector.load %arg1[%c0, %c0_0] : memref<16x32xf32, #tpu.memory_space<vmem>>, vector<16x32xf32>
    %c0_1 = arith.constant 0 : index
    %c0_2 = arith.constant 0 : index
    %1 = vector.load %arg2[%c0_1, %c0_2] : memref<32x32xf32, #tpu.memory_space<vmem>>, vector<32x32xf32>
    %cst = arith.constant dense<0.000000e+00> : vector<16x32xf32>
    %2 = tpu.matmul %0, %1, %cst {dimension_numbers = #tpu.dot_dimension_numbers<[1], [1], [0], [0], [0, 0, 1, 0], [], []>} : vector<16x32xf32>, vector<32x32xf32>, vector<16x32xf32> -> vector<16x32xf32>
    %c0_3 = arith.constant 0 : index
    %c0_4 = arith.constant 0 : index
    %3 = vector.load %arg3[%c0_3, %c0_4] : memref<1x32xf32, #tpu.memory_space<vmem>>, vector<1x32xf32>
    %4 = vector.broadcast %3 : vector<1x32xf32> to vector<16x32xf32>
    %5 = arith.addf %2, %4 : vector<16x32xf32>
    %cst_5 = arith.constant 0.000000e+00 : f32
    %6 = vector.broadcast %cst_5 : f32 to vector<16x32xf32>
    %7 = arith.maximumf %5, %6 : vector<16x32xf32>
    %cst_6 = arith.constant dense<0.000000e+00> : vector<16xf32>
    %8 = vector.multi_reduction <add>, %7, %cst_6 [1] : vector<16x32xf32> to vector<16xf32>
    %9 = vector.shape_cast %8 : vector<16xf32> to vector<16x1xf32>
    %cst_7 = arith.constant 3.125000e-02 : f32
    %10 = vector.broadcast %cst_7 : f32 to vector<16x1xf32>
    %11 = arith.mulf %9, %10 : vector<16x1xf32>
    %12 = arith.mulf %7, %7 : vector<16x32xf32>
    %cst_8 = arith.constant dense<0.000000e+00> : vector<16xf32>
    %13 = vector.multi_reduction <add>, %12, %cst_8 [1] : vector<16x32xf32> to vector<16xf32>
    %14 = vector.shape_cast %13 : vector<16xf32> to vector<16x1xf32>
    %cst_9 = arith.constant 3.125000e-02 : f32
    %15 = vector.broadcast %cst_9 : f32 to vector<16x1xf32>
    %16 = arith.mulf %14, %15 : vector<16x1xf32>
    %17 = arith.mulf %11, %11 : vector<16x1xf32>
    %18 = arith.subf %16, %17 : vector<16x1xf32>
    %cst_10 = arith.constant 0.000000e+00 : f32
    %19 = vector.broadcast %cst_10 : f32 to vector<16x1xf32>
    %20 = arith.maximumf %18, %19 : vector<16x1xf32>
    %cst_11 = arith.constant 9.99999996E-13 : f32
    %21 = vector.broadcast %cst_11 : f32 to vector<16x1xf32>
    %22 = arith.addf %20, %21 : vector<16x1xf32>
    %23 = math.rsqrt %22 : vector<16x1xf32>
    %24 = vector.broadcast %11 : vector<16x1xf32> to vector<16x32xf32>
    %25 = arith.subf %7, %24 : vector<16x32xf32>
    %26 = vector.broadcast %23 : vector<16x1xf32> to vector<16x32xf32>
    %27 = arith.mulf %25, %26 : vector<16x32xf32>
    %c0_12 = arith.constant 0 : index
    %c0_13 = arith.constant 0 : index
    %28 = vector.load %arg4[%c0_12, %c0_13] : memref<1x32xf32, #tpu.memory_space<vmem>>, vector<1x32xf32>
    %29 = vector.broadcast %28 : vector<1x32xf32> to vector<16x32xf32>
    %30 = arith.mulf %27, %29 : vector<16x32xf32>
    %c0_14 = arith.constant 0 : index
    %c0_15 = arith.constant 0 : index
    %31 = vector.load %arg5[%c0_14, %c0_15] : memref<1x32xf32, #tpu.memory_space<vmem>>, vector<1x32xf32>
    %32 = vector.broadcast %31 : vector<1x32xf32> to vector<16x32xf32>
    %33 = arith.addf %30, %32 : vector<16x32xf32>
    %c0_16 = arith.constant 0 : index
    %c0_17 = arith.constant 0 : index
    %34 = vector.load %arg6[%c0_16, %c0_17] : memref<16x32xf32, #tpu.memory_space<vmem>>, vector<16x32xf32>
    tpu.vector_store %arg6[%c0_16, %c0_17], %33 {strides = array<i32>} : memref<16x32xf32, #tpu.memory_space<vmem>>, vector<16x32xf32>,
    return
  }
  func.func @transform_0(%arg0: i32) -> (i32, i32) {
    %c0_i32 = arith.constant 0 : i32
    %c0_i32_0 = arith.constant 0 : i32
    return %arg0, %c0_i32 : i32, i32
  }
  func.func @transform_1(%arg0: i32) -> (i32, i32) {
    %c0_i32 = arith.constant 0 : i32
    %c0_i32_0 = arith.constant 0 : i32
    %c0_i32_1 = arith.constant 0 : i32
    return %c0_i32, %c0_i32_0 : i32, i32
  }
  func.func @transform_2(%arg0: i32) -> (i32, i32) {
    %c0_i32 = arith.constant 0 : i32
    %c0_i32_0 = arith.constant 0 : i32
    %c0_i32_1 = arith.constant 0 : i32
    return %c0_i32, %c0_i32_0 : i32, i32
  }
  func.func @transform_3(%arg0: i32) -> (i32, i32) {
    %c0_i32 = arith.constant 0 : i32
    %c0_i32_0 = arith.constant 0 : i32
    %c0_i32_1 = arith.constant 0 : i32
    return %c0_i32, %c0_i32_0 : i32, i32
  }
  func.func @transform_4(%arg0: i32) -> (i32, i32) {
    %c0_i32 = arith.constant 0 : i32
    %c0_i32_0 = arith.constant 0 : i32
    %c0_i32_1 = arith.constant 0 : i32
    return %c0_i32, %c0_i32_0 : i32, i32
  }
  func.func @transform_5(%arg0: i32) -> (i32, i32) {
    %c0_i32 = arith.constant 0 : i32
    %c0_i32_0 = arith.constant 0 : i32
    return %arg0, %c0_i32 : i32, i32
  }
}

</mosaic_0001>

<llo_original>
// kernel: tpu_custom_call.1
$region0: #{tpu_custom_call.1}
  #allocation0 [shape = 'u32[]', space=smem, size = 0x4, offset = 0x4, fixed_abs, tag = 'smem constant byte address 0x4 - core index']
  #allocation1 [shape = 'u32[144,128]{1,0:T(1,128)}', space=vmem, size = 0x12000, scoped, tag = 'internal scratch']
  %s0 = inlined_call_operand.hbm [shape: f32[16,32], index: 0, kind: input, shape index: {}]
  %s1 = inlined_call_operand.hbm [shape: f32[32,32], index: 1, kind: input, shape index: {}]
  %s2 = inlined_call_operand.vmem [shape: f32[1,32], index: 2, kind: input, shape index: {}]
  %s3 = inlined_call_operand.vmem [shape: f32[1,32], index: 3, kind: input, shape index: {}]
  %s4 = inlined_call_operand.vmem [shape: f32[1,32], index: 4, kind: input, shape index: {}]
  %s5 = inlined_call_operand.hbm [shape: f32[16,32], index: 5, kind: output, shape index: {}]
  %s6 = sld [smem:[#allocation0]]
  $region38: #{tpu_custom_call.1} parent=0
    _
  %s8 = ssub.s32 1, %s6
  %s9 = scalar_select 0, %s8, %s6
  $region1: #{tpu_custom_call.1} parent=0
    #allocation2 [shape = 'u8[8192]{0}', space=vmem, size = 0x2000, scoped, tag = 'input window, operand 0, single buffered']
    #allocation3 [shape = 's32[1]{0}', space=sflag, size = 0x4, scoped, tag = 'scoped memory for tpu_custom_call.1']
    #allocation4 [shape = 's32[1]{0}', space=sflag, size = 0x4, scoped, tag = 'scoped memory for tpu_custom_call.1']
    #allocation5 [shape = 'u8[16384]{0}', space=vmem, size = 0x4000, scoped, tag = 'input window, operand 1, single buffered']
    #allocation6 [shape = 's32[1]{0}', space=sflag, size = 0x4, scoped, tag = 'scoped memory for tpu_custom_call.1']
    #allocation7 [shape = 'u8[8192]{0}', space=vmem, size = 0x2000, scoped, tag = 'output window, operand 0, single buffered']
    %10 = vsyncpa [#allocation3], 0
    %11 = vsyncpa [#allocation6], 0
    %12 = vsyncpa [#allocation4], 0
    // Predicated region
    $region2: #{tpu_custom_call.1} parent=1 // pred_check
      _
    $region3: #{tpu_custom_call.1} parent=1 // pred_check_branch
      %14 = sbr.rel (0) target = $region5
    $region4: #{tpu_custom_call.1} parent=1 // pred_region
      %s16 = ssub.s32 256, 256
      %17 = vsyncadd [#allocation3], %s16
      %s18 = sshll.u32 [#allocation2], 4
      %s19 = int_to_ptr.vmem [resolvable:$true] %s18
      %24 = dma.hbm_to_vmem [thread:$0]  %s0, 256, %s19, [#allocation3], 128, 128, 8
    $region5: #{tpu_custom_call.1} parent=1 // pred_fallthru
      _
    // Predicated region
    $region6: #{tpu_custom_call.1} parent=1 // pred_check
      _
    $region7: #{tpu_custom_call.1} parent=1 // pred_check_branch
      %26 = sbr.rel (0) target = $region9
    $region8: #{tpu_custom_call.1} parent=1 // pred_region
      %s28 = ssub.s32 512, 512
      %29 = vsyncadd [#allocation6], %s28
      %s30 = sshll.u32 [#allocation5], 4
      %s31 = int_to_ptr.vmem [resolvable:$true] %s30
      %36 = dma.hbm_to_vmem [thread:$0]  %s1, 512, %s31, [#allocation6], 128, 128, 8
    $region9: #{tpu_custom_call.1} parent=1 // pred_fallthru
      _
    // Predicated region
    $region10: #{tpu_custom_call.1} parent=1 // pred_check
      _
    $region11: #{tpu_custom_call.1} parent=1 // pred_check_branch
      %38 = sbr.rel (0) target = $region13
    $region12: #{tpu_custom_call.1} parent=1 // pred_region
      _
    $region13: #{tpu_custom_call.1} parent=1 // pred_fallthru
      _
    // Predicated region
    $region14: #{tpu_custom_call.1} parent=1 // pred_check
      _
    $region15: #{tpu_custom_call.1} parent=1 // pred_check_branch
      %40 = sbr.rel (0) target = $region17
    $region16: #{tpu_custom_call.1} parent=1 // pred_region
      _
    $region17: #{tpu_custom_call.1} parent=1 // pred_fallthru
      _
    // Predicated region
    $region18: #{tpu_custom_call.1} parent=1 // pred_check
      _
    $region19: #{tpu_custom_call.1} parent=1 // pred_check_branch
      %42 = sbr.rel (0) target = $region21
    $region20: #{tpu_custom_call.1} parent=1 // pred_region
      _
    $region21: #{tpu_custom_call.1} parent=1 // pred_fallthru
      _
    // Predicated region
    $region22: #{tpu_custom_call.1} parent=1 // pred_check
      _
    $region23: #{tpu_custom_call.1} parent=1 // pred_check_branch
      %44 = sbr.rel (0) target = $region25
    $region24: #{tpu_custom_call.1} parent=1 // pred_region
      %45 = dma.done [#allocation3], 256
    $region25: #{tpu_custom_call.1} parent=1 // pred_fallthru
      _
    // Predicated region
    $region26: #{tpu_custom_call.1} parent=1 // pred_check
      _
    $region27: #{tpu_custom_call.1} parent=1 // pred_check_branch
      %47 = sbr.rel (0) target = $region29
    $region28: #{tpu_custom_call.1} parent=1 // pred_region
      %48 = dma.done [#allocation6], 512
    $region29: #{tpu_custom_call.1} parent=1 // pred_fallthru
      _
    %v49 = vld [vmem:[#allocation2] sm:$0xff]
    %v50 = vld [vmem:[#allocation2 + $0x8] sm:$0xff]
    %v51 = vld [vmem:[#allocation5] sm:$0xff]
    %v52 = vld [vmem:[#allocation5 + $0x8] sm:$0xff]
    %v53 = vld [vmem:[#allocation5 + $0x10] sm:$0xff]
    %v54 = vld [vmem:[#allocation5 + $0x18] sm:$0xff]
    %v55 = vld [vmem:[%s2] sm:$0x1]
    %v57 = vlaneseq
    %v58 = vshrl.u32 %v57, 7
    %v59 = vsub.s32 0, %v58
    %v60 = vrot.slane %v55, %v59
    %vm62 = vcmask 261120
    %v64 = vsel %vm62, %v49, 0
    %v67 = vsel %vm62, %v50, 0
    %v70 = vsel %vm62, %v51, 0
    %v73 = vsel %vm62, %v52, 0
    %v76 = vsel %vm62, %v53, 0
    %v79 = vsel %vm62, %v54, 0
    %81 = vmatprep.subr.mxu0 0.0
    %82 = vmatpush1.xpose.msra.mxu0 0.0
    %83 = vmatprep.subr.mxu0 0.0
    %84 = vmatpush1.xpose.msra.mxu0 0.0
    %85 = vmatprep.subr.mxu0 0.0
    %86 = vmatpush1.xpose.msra.mxu0 0.0
    %87 = vmatprep.subr.mxu0 0.0
    %88 = vmatpush1.xpose.msra.mxu0 0.0
    %89 = vmatprep.subr.mxu0 0.0
    %90 = vmatpush1.xpose.msra.mxu0 0.0
    %91 = vmatprep.subr.mxu0 0.0
    %92 = vmatpush1.xpose.msra.mxu0 0.0
    %93 = vmatprep.subr.mxu0 0.0
    %94 = vmatpush1.xpose.msra.mxu0 0.0
    %95 = vmatprep.subr.mxu0 0.0
    %96 = vmatpush1.xpose.msra.mxu0 0.0
    %97 = vmatprep.subr.mxu0 0.0
    %98 = vmatpush1.xpose.msra.mxu0 0.0
    %99 = vmatprep.subr.mxu0 0.0
    %100 = vmatpush1.xpose.msra.mxu0 0.0
    %101 = vmatprep.subr.mxu0 0.0
    %102 = vmatpush1.xpose.msra.mxu0 0.0
    %103 = vmatprep.subr.mxu0 0.0
    %104 = vmatpush1.xpose.msra.mxu0 0.0
    %105 = vmatprep.subr.mxu0 0.0
    %106 = vmatpush1.xpose.msra.mxu0 %v79
    %107 = vmatprep.subr.mxu0 0.0
    %108 = vmatpush1.xpose.msra.mxu0 %v76
    %109 = vmatprep.subr.mxu0 0.0
    %110 = vmatpush1.xpose.msra.mxu0 %v73
    %111 = vmatprep.subr.mxu0 0.0
    %112 = vmatpush1.xpose.msra.mxu0 %v70
    %113 = vmatprep.subr.mxu0 0.0
    %114 = vmatpush2.xpose.msra.mxu0 0.0
    %115 = vmatprep.subr.mxu0 0.0
    %116 = vmatpush2.xpose.msra.mxu0 0.0
    %117 = vmatprep.subr.mxu0 0.0
    %118 = vmatpush2.xpose.msra.mxu0 0.0
    %119 = vmatprep.subr.mxu0 0.0
    %120 = vmatpush2.xpose.msra.mxu0 0.0
    %121 = vmatprep.subr.mxu0 0.0
    %122 = vmatpush2.xpose.msra.mxu0 0.0
    %123 = vmatprep.subr.mxu0 0.0
    %124 = vmatpush2.xpose.msra.mxu0 0.0
    %125 = vmatprep.subr.mxu0 0.0
    %126 = vmatpush2.xpose.msra.mxu0 0.0
    %127 = vmatprep.subr.mxu0 0.0
    %128 = vmatpush2.xpose.msra.mxu0 0.0
    %129 = vmatprep.subr.mxu0 0.0
    %130 = vmatpush2.xpose.msra.mxu0 0.0
    %131 = vmatprep.subr.mxu0 0.0
    %132 = vmatpush2.xpose.msra.mxu0 0.0
    %133 = vmatprep.subr.mxu0 0.0
    %134 = vmatpush2.xpose.msra.mxu0 0.0
    %135 = vmatprep.subr.mxu0 0.0
    %136 = vmatpush2.xpose.msra.mxu0 0.0
    %137 = vmatprep.subr.mxu0 0.0
    %138 = vmatpush2.xpose.msra.mxu0 0.0
    %139 = vmatprep.subr.mxu0 0.0
    %140 = vmatpush2.xpose.msra.mxu0 0.0
    %141 = vmatprep.subr.mxu0 0.0
    %142 = vmatpush2.xpose.msra.mxu0 0.0
    %143 = vmatprep.subr.mxu0 0.0
    %144 = vmatpush2.xpose.msra.mxu0 0.0
    %145 = vmatprep.mubr.f32.mxu0 0.0
    %146 = vmatmul.mubr.f32.gmra.mxu0 %v64
    %v147 = vpop.f32.mrf.mxu0
    %v148 = vadd.f32 %v60, %v147
    %v149 = vpop.f32.mrf.mxu0
    %150 = vmatprep.mubr.f32.mxu0 0.0
    %151 = vmatmul.mubr.f32.gmra.mxu0 %v67
    %v152 = vpop.f32.mrf.mxu0
    %v153 = vadd.f32 %v60, %v152
    %v154 = vpop.f32.mrf.mxu0
    %155 = vdwg.mxu0
    %v156 = vmax.f32 %v148, 0.0
    %v157 = vmax.f32 %v153, 0.0
    %v158 = vsel %vm62, %v156, 0.0
    %159 = vadd.xlane.f32.xlu0 %v158
    %v160 = vpop.xlane.xlu0 %159
    %v161 = vsel %vm62, %v157, 0.0
    %162 = vadd.xlane.f32.xlu0 %v161
    %v163 = vpop.xlane.xlu0 %162
    %v164 = vmul.f32 %v160, 0.03125
    %v165 = vmul.f32 %v163, 0.03125
    %v166 = vmul.f32 %v156, %v156
    %v167 = vmul.f32 %v157, %v157
    %v168 = vsel %vm62, %v166, 0.0
    %169 = vadd.xlane.f32.xlu0 %v168
    %v170 = vpop.xlane.xlu0 %169
    %v171 = vsel %vm62, %v167, 0.0
    %172 = vadd.xlane.f32.xlu0 %v171
    %v173 = vpop.xlane.xlu0 %172
    %v174 = vmul.f32 %v170, 0.03125
    %v175 = vmul.f32 %v173, 0.03125
    %v176 = vmul.f32 %v164, %v164
    %v177 = vmul.f32 %v165, %v165
    %v178 = vsub.f32 %v174, %v176
    %v179 = vsub.f32 %v175, %v177
    %v180 = vmax.f32 %v178, 0.0
    %v181 = vmax.f32 %v179, 0.0
    %v182 = vadd.f32 %v180, 1e-12
    %v183 = vadd.f32 %v181, 1e-12
    %v184 = vrsqrt.pop %v182
    %v185 = vrsqrt.pop %v183
    %v186 = vsub.f32 %v156, %v164
    %v187 = vsub.f32 %v157, %v165
    %v188 = vmul.f32 %v186, %v184
    %v189 = vmul.f32 %v187, %v185
    %v190 = vld [vmem:[%s3] sm:$0x1]
    %v192 = vlaneseq
    %v193 = vshrl.u32 %v192, 7
    %v194 = vsub.s32 0, %v193
    %v195 = vrot.slane %v190, %v194
    %v197 = vmul.f32 %v188, %v195
    %v198 = vmul.f32 %v189, %v195
    %v199 = vld [vmem:[%s4] sm:$0x1]
    %v201 = vlaneseq
    %v202 = vshrl.u32 %v201, 7
    %v203 = vsub.s32 0, %v202
    %v204 = vrot.slane %v199, %v203
    %v206 = vadd.f32 %v197, %v204
    %v207 = vadd.f32 %v198, %v204
    %208 = vst.msk [vmem:[#allocation7] sm:$0xff] %vm62, %v206
    %209 = vst.msk [vmem:[#allocation7 + $0x8] sm:$0xff] %vm62, %v207
    // Predicated region
    $region30: #{tpu_custom_call.1} parent=1 // pred_check
      _
    $region31: #{tpu_custom_call.1} parent=1 // pred_check_branch
      %211 = sbr.rel (0) target = $region33
    $region32: #{tpu_custom_call.1} parent=1 // pred_region
      %s213 = ssub.s32 256, 256
      %214 = vsyncadd [#allocation4], %s213
      %s215 = sshll.u32 [#allocation7], 4
      %s216 = int_to_ptr.vmem [resolvable:$true] %s215
      %221 = dma.vmem_to_hbm [thread:$0]  %s216, 256, %s5, [#allocation4], 128, 128, 8
    $region33: #{tpu_custom_call.1} parent=1 // pred_fallthru
      _
    // Predicated region
    $region34: #{tpu_custom_call.1} parent=1 // pred_check
      _
    $region35: #{tpu_custom_call.1} parent=1 // pred_check_branch
      %223 = sbr.rel (0) target = $region37
    $region36: #{tpu_custom_call.1} parent=1 // pred_region
      %224 = dma.done [#allocation4], 256
    $region37: #{tpu_custom_call.1} parent=1 // pred_fallthru
      _
    %225 = vsyncpa [#allocation3], 1
    %226 = vsyncpa [#allocation6], 1
    %227 = vsyncpa [#allocation4], 1

</llo_original>
